<compile_context>
chip_gen: v6e
topology: v6e:2x2x1
jax: 0.10.0
libtpu: 0.0.40
codegen_flags: <defaults>
</compile_context>

<pallas_src>
import functools
import math

import jax
import jax.numpy as jnp
from jax.experimental import pallas as pl
from jax.experimental.pallas import tpu as pltpu


def _round_up(x, m):
    return ((x + m - 1) // m) * m


def _pad_dim(d):
    # Lane-friendly padding: full 128-lane multiples once the dim is big enough for the
    # zero bloat to be cheap (< 2x); otherwise just keep reshapes/views free (mult of 8).
    return _round_up(d, 128) if d >= 64 else _round_up(d, 8)


def _device_info():
    """Returns (vmem_capacity_bytes, bf16_vpu_eup, tensorcores_per_chip)."""
    kind = ""
    try:
        kind = jax.devices()[0].device_kind.lower()
    except Exception:
        pass
    is_v7 = "v7" in kind
    is_v6 = "v6" in kind
    vmem_cap = None
    try:  # trace-time hardware query; fall back to device_kind heuristics if unavailable
        vmem_cap = int(pltpu.get_tpu_info().vmem_capacity_bytes)
    except Exception:
        vmem_cap = None
    if vmem_cap is None:
        vmem_cap = (64 if is_v7 else 128) * 1024 * 1024
    bf16_eup = is_v6 or is_v7            # v5e has no bf16 VPU/EUP
    num_cores = 2 if is_v7 else 1
    return vmem_cap, bf16_eup, num_cores


def _tile_vmem_bytes(tb, ti, e, h, enc_isz, ew_isz):
    """Honest per-step VMEM estimate: every double-buffered block plus the big slabs."""
    b = 0
    b += 2 * tb * ti * e * enc_isz       # enc tile, double-buffered
    b += 2 * tb * h * 4                  # Ws tile (f32), double-buffered
    b += 2 * tb * ti * 4                 # mask tile (f32), double-buffered
    b += 2 * tb * e * 4                  # context output tile, double-buffered
    b += 2 * tb * ti * 4                 # attention output tile, double-buffered
    b += 2 * (e * h * enc_isz + h * 4)   # Wv^T and w^T (grid-invariant, still dbl-buffered)
    b += tb * ti * h * 4                 # Vh f32 accumulate slab
    b += tb * ti * h * ew_isz            # tanh slab (compute dtype)
    b += tb * ti * e * 4                 # f32 upcast of enc for the context reduce
    b += 3 * tb * ti * 4                 # e / logits / p f32 slabs
    return b


def _cba_kernel(enc_ref, ws_ref, mask_ref, wv_t_ref, wt_ref, c_ref, a_ref, *,
                scaling, ew_dtype):
    """One batch tile (TB rows) per grid step.

    enc_ref  : (TB, Ti, E)  encoder outputs, native dtype (f32 or bf16)
    ws_ref   : (TB, H)      precomputed  W s + b  (f32)
    mask_ref : (TB, Ti)     f32 {0,1,2}: 1 == masked (fill -1e-6), 2 == Ti padding (exclude)
    wv_t_ref : (E, H)       attenV.weight^T (same dtype as enc)
    wt_ref   : (1, H)       attenwT.weight (f32)
    c_ref    : (TB, E)      context output (f32, lane-dense slab)
    a_ref    : (TB, Ti)     attention distribution (f32, lane-dense slab)
    """
    tb, ti, e_dim = enc_ref.shape
    h_dim = ws_ref.shape[-1]

    enc = enc_ref[...]                                                 # (TB, Ti, E)

    # V h for the whole tile: ONE (TB*Ti, E) @ (E, H) MXU matmul, f32 accumulation.
    vh = jnp.dot(enc.reshape(tb * ti, e_dim), wv_t_ref[...],
                 preferred_element_type=jnp.float32).reshape(tb, ti, h_dim)

    # t = tanh(Vh + Ws + b).  Elementwise chain in ew_dtype: bf16 on v6e/v7x when the
    # activations are bf16 (~2x EUP/VALU throughput, half the vreg footprint), f32 else.
    pre = vh + ws_ref[...][:, None, :]                                 # (TB, Ti, H) f32
    t = jnp.tanh(pre.astype(ew_dtype))

    # e = w^T t via broadcast-multiply + f32 lane reduction (no XLU transpose of t).
    wt = wt_ref[...].reshape(1, 1, h_dim).astype(ew_dtype)
    e_scores = jnp.sum((t * wt).astype(jnp.float32), axis=-1)          # (TB, Ti) f32

    # masked_fill(mask, -1e-6), exactly as the PyTorch module (the -1e-6 fill is kept
    # faithful even though it looks like a typo for -1e9).  Padded Ti columns (sentinel
    # 2.0 in the mask) are fully excluded from the softmax.
    mf = mask_ref[...]
    logits = jnp.where(mf == 1.0, jnp.float32(scaling * -1e-6),
                       jnp.float32(scaling) * e_scores)
    logits = jnp.where(mf >= 2.0, jnp.float32(-1e30), logits)

    # Row-wise softmax over Ti (lane axis); normalization deferred past the context.
    m = jnp.max(logits, axis=-1, keepdims=True)                        # (TB, 1)
    p = jnp.exp(logits - m)                                            # (TB, Ti) f32, unnormalized
    inv_l = pl.reciprocal(jnp.sum(p, axis=-1, keepdims=True), approx=False)

    # Context c = a @ enc as a VPU broadcast-multiply + sublane reduction over Ti
    # (the batched M=1 MXU matmul used ~1/256 of the MXU rows; this rides otherwise-idle
    # VALU/XLU slots and keeps p in f32).
    c_un = jnp.sum(p[:, :, None] * enc.astype(jnp.float32), axis=1)    # (TB, E) f32

    c_ref[...] = (c_un * inv_l).astype(c_ref.dtype)
    a_ref[...] = (p * inv_l).astype(a_ref.dtype)


def content_based_attention(dec_inputs, enc_outputs, mask, params, scaling=2.0,
                            block_batch=128, compute_dtype=None):
    """dec_inputs (N,1,H), enc_outputs (N,Ti,E), mask (N,Ti) bool (or None).

    Returns (atten_c (N,E) f32, atten_a (N,1,Ti) f32) — same semantics as the PyTorch module.
    """
    wv, ww, bw, wt = params["wv"], params["ww"], params["bw"], params["wt"]
    N, To, H = dec_inputs.shape
    assert To == 1, "forward's .view(N,1,H) implies To == 1"
    _, Ti, E = enc_outputs.shape

    enc_dtype = enc_outputs.dtype
    enc_isz = jnp.dtype(enc_dtype).itemsize

    vmem_cap, bf16_eup, num_cores = _device_info()
    if compute_dtype is None:
        # bf16 tanh chain only when activations are already bf16 AND the chip's VPU/EUP
        # are bf16-capable (v6e / v7x).  f32 elsewhere (including v5e).
        compute_dtype = (jnp.bfloat16
                         if (bf16_eup and jnp.dtype(enc_dtype) == jnp.dtype(jnp.bfloat16))
                         else jnp.float32)
    ew_isz = jnp.dtype(compute_dtype).itemsize

    # Hoist Ws = dec @ Ww^T + b into one batched XLA matmul (MXU-efficient, frees VMEM).
    ws = (dec_inputs[:, 0, :].astype(jnp.float32) @ ww.T.astype(jnp.float32)
          + bw.astype(jnp.float32))                                    # (N, H) f32

    if mask is None:
        mask_f = jnp.zeros((N, Ti), jnp.float32)
    else:
        mask_f = mask.astype(jnp.float32)                              # {0, 1}

    # ---- lane/sublane-friendly padding of Ti / E / H ----
    ti_pad, e_pad, h_pad = _pad_dim(Ti), _pad_dim(E), _pad_dim(H)

    # Weights: Wv^T in the activation dtype (bf16 MXU with f32 accumulation when enc is bf16).
    wv_t = jnp.pad(wv.T.astype(enc_dtype), ((0, e_pad - E), (0, h_pad - H)))
    wt2 = jnp.pad(wt.reshape(1, H).astype(jnp.float32), ((0, 0), (0, h_pad - H)))

    # ---- generation-aware VMEM budget & batch tile ----
    vmem_limit = min(int(vmem_cap * 0.75), 96 * 1024 * 1024)
    tile_budget = int(vmem_limit * 0.75)

    tb = min(_round_up(block_batch, 8), _round_up(N, 8))
    if num_cores > 1 and N >= 32:
        # keep >= 4 grid steps so the "parallel" batch axis actually feeds both v7x TCs
        tb = min(tb, _round_up(math.ceil(N / 4), 8))
    while tb > 8 and _tile_vmem_bytes(tb, ti_pad, e_pad, h_pad, enc_isz, ew_isz) > tile_budget:
        tb = max(8, _round_up(tb // 2, 8))
    est = _tile_vmem_bytes(tb, ti_pad, e_pad, h_pad, enc_isz, ew_isz)
    if est > tile_budget:  # even tb == 8 is big: give the compiler the headroom it needs
        vmem_limit = min(int(vmem_cap * 0.9), max(vmem_limit, est + (8 << 20)))
    # NOTE: for very long Ti a flash-style Ti strip-mine inside the kernel would shrink
    # the (TB,Ti,H) slab further; deferred — the honest budget above keeps tb runnable.

    n_pad = _round_up(N, tb)

    enc_p = jnp.pad(enc_outputs, ((0, n_pad - N), (0, ti_pad - Ti), (0, e_pad - E)))
    ws_p = jnp.pad(ws, ((0, n_pad - N), (0, h_pad - H)))
    # padded batch rows / Ti columns get the sentinel 2.0 -> excluded from the softmax
    mask_p = jnp.pad(mask_f, ((0, n_pad - N), (0, ti_pad - Ti)), constant_values=2.0)

    kernel = functools.partial(_cba_kernel, scaling=float(scaling), ew_dtype=compute_dtype)

    c_pad, a_pad = pl.pallas_call(
        kernel,
        out_shape=(
            jax.ShapeDtypeStruct((n_pad, e_pad), jnp.float32),
            jax.ShapeDtypeStruct((n_pad, ti_pad), jnp.float32),
        ),
        grid_spec=pltpu.PrefetchScalarGridSpec(
            num_scalar_prefetch=0,
            grid=(n_pad // tb,),
            in_specs=[
                pl.BlockSpec((tb, ti_pad, e_pad), lambda b: (b, 0, 0)),  # enc tile
                pl.BlockSpec((tb, h_pad), lambda b: (b, 0)),             # Ws + b tile
                pl.BlockSpec((tb, ti_pad), lambda b: (b, 0)),            # mask tile
                # grid-invariant weights (constant index_map; counted x2 in the budget —
                # single-buffering them is a further VMEM saving once verified)
                pl.BlockSpec((e_pad, h_pad), lambda b: (0, 0)),          # Wv^T (resident)
                pl.BlockSpec((1, h_pad), lambda b: (0, 0)),              # w^T  (resident)
            ],
            out_specs=[
                pl.BlockSpec((tb, e_pad), lambda b: (b, 0)),             # context, lane-dense
                pl.BlockSpec((tb, ti_pad), lambda b: (b, 0)),            # attention, lane-dense
            ],
        ),
        compiler_params=pltpu.CompilerParams(
            dimension_semantics=("parallel",),
            vmem_limit_bytes=int(vmem_limit)),
    )(enc_p, ws_p, mask_p, wv_t, wt2)

    atten_c = c_pad[:N, :E]                                             # (N, E)
    atten_a = a_pad[:N, :Ti].reshape(N, 1, Ti)                          # (N, 1, Ti)
    return atten_c, atten_a


def reference(dec_inputs, enc_outputs, mask, params, scaling=2.0):
    """Pure-JAX mirror of the PyTorch forward."""
    wv, ww, bw, wt = params["wv"], params["ww"], params["bw"], params["wt"]
    vh = enc_outputs @ wv.T                                             # (N, Ti, H)
    ws = (dec_inputs[:, 0, :] @ ww.T + bw)[:, None, :]                  # (N, 1, H)
    e = jnp.tanh(vh + ws) @ wt.T                                        # (N, Ti, 1)
    e = e[..., 0]                                                       # (N, Ti)
    masked = jnp.where(mask, jnp.float32(-1e-6), e) if mask is not None else e
    a = jax.nn.softmax(scaling * masked, axis=1)                        # (N, Ti)
    c = jnp.einsum("nt,nte->ne", a, enc_outputs)                        # (N, E)
    return c, a[:, None, :]


def init_params(key, hidden_size, eproj_size):
    k1, k2, k3, k4 = jax.random.split(key, 4)

    def u(k, shape, fan_in):
        bound = 1.0 / jnp.sqrt(fan_in)
        return jax.random.uniform(k, shape, jnp.float32, -bound, bound)

    return {
        "wv": u(k1, (hidden_size, eproj_size), eproj_size),             # attenV.weight
        "ww": u(k2, (hidden_size, hidden_size), hidden_size),           # attenW.weight
        "bw": u(k3, (hidden_size,), hidden_size),                       # attenW.bias
        "wt": u(k4, (1, hidden_size), hidden_size),                     # attenwT.weight
    }


if __name__ == "__main__":
    N, To, Ti, H, E = 2, 1, 16, 32, 16

    key = jax.random.PRNGKey(0)
    kp, kd, ke, km = jax.random.split(key, 4)
    params = init_params(kp, H, E)

    dec_inputs = jax.random.normal(kd, (N, To, H), jnp.float32)
    enc_outputs = jax.random.normal(ke, (N, Ti, E), jnp.float32)
    mask = jax.random.uniform(km, (N, Ti)) > 0.7                        # bool mask

    # --- f32 path ---
    c, a = content_based_attention(dec_inputs, enc_outputs, mask, params)
    jax.block_until_ready((c, a))
    c_ref, a_ref = reference(dec_inputs, enc_outputs, mask, params)
    assert c.shape == (N, E) and a.shape == (N, 1, Ti)
    assert jnp.allclose(c, c_ref, atol=2e-3, rtol=2e-3), "context mismatch (f32)"
    assert jnp.allclose(a, a_ref, atol=2e-3, rtol=2e-3), "attention mismatch (f32)"

    # --- multi-tile grid + batch padding path ---
    N2 = 20
    kd2, ke2, km2 = jax.random.split(jax.random.PRNGKey(1), 3)
    dec2 = jax.random.normal(kd2, (N2, To, H), jnp.float32)
    enc2 = jax.random.normal(ke2, (N2, Ti, E), jnp.float32)
    mask2 = jax.random.uniform(km2, (N2, Ti)) > 0.7
    c2, a2 = content_based_attention(dec2, enc2, mask2, params, block_batch=8)
    jax.block_until_ready((c2, a2))
    c2_ref, a2_ref = reference(dec2, enc2, mask2, params)
    assert jnp.allclose(c2, c2_ref, atol=2e-3, rtol=2e-3), "context mismatch (tiled)"
    assert jnp.allclose(a2, a2_ref, atol=2e-3, rtol=2e-3), "attention mismatch (tiled)"

    # --- ragged dims: exercises Ti/E/H padding and padded-column softmax exclusion ---
    N3, Ti3, H3, E3 = 5, 70, 96, 40
    kp3, kd3, ke3, km3 = jax.random.split(jax.random.PRNGKey(2), 4)
    params3 = init_params(kp3, H3, E3)
    dec3 = jax.random.normal(kd3, (N3, 1, H3), jnp.float32)
    enc3 = jax.random.normal(ke3, (N3, Ti3, E3), jnp.float32)
    mask3 = jax.random.uniform(km3, (N3, Ti3)) > 0.6
    c3, a3 = content_based_attention(dec3, enc3, mask3, params3)
    jax.block_until_ready((c3, a3))
    c3_ref, a3_ref = reference(dec3, enc3, mask3, params3)
    assert jnp.allclose(c3, c3_ref, atol=2e-3, rtol=2e-3), "context mismatch (padded dims)"
    assert jnp.allclose(a3, a3_ref, atol=2e-3, rtol=2e-3), "attention mismatch (padded dims)"

    # --- bf16 DMA path (enc/dec kept bf16; bf16 tanh chain on v6e/v7x, f32 accumulation) ---
    dec_bf = dec_inputs.astype(jnp.bfloat16)
    enc_bf = enc_outputs.astype(jnp.bfloat16)
    c_bf, a_bf = content_based_attention(dec_bf, enc_bf, mask, params)
    jax.block_until_ready((c_bf, a_bf))
    c_refb, a_refb = reference(dec_bf.astype(jnp.float32),
                               enc_bf.astype(jnp.float32), mask, params)
    assert jnp.allclose(c_bf, c_refb, atol=5e-2, rtol=5e-2), "context mismatch (bf16)"
    assert jnp.allclose(a_bf, a_refb, atol=5e-2, rtol=5e-2), "attention mismatch (bf16)"

    print("KERNEL_OK")
</pallas_src>

<mosaic_0001>
module attributes {stable_mosaic.version = 11 : i64} {
  func.func @_cba_kernel(%arg0: i32, %arg1: memref<8x16x16xf32, #tpu.memory_space<vmem>>, %arg2: memref<8x32xf32, #tpu.memory_space<vmem>>, %arg3: memref<8x16xf32, #tpu.memory_space<vmem>>, %arg4: memref<16x32xf32, #tpu.memory_space<vmem>>, %arg5: memref<1x32xf32, #tpu.memory_space<vmem>>, %arg6: memref<8x16xf32, #tpu.memory_space<vmem>>, %arg7: memref<8x16xf32, #tpu.memory_space<vmem>>) attributes {dimension_semantics = [#tpu.dimension_semantics<parallel>], iteration_bounds = array<i64: 1>, scalar_prefetch = 0 : i64, scratch_operands = 0 : i64, tpu.core_type = #tpu.core_type<tc>, window_params = [{transform_indices = @transform_0, window_bounds = array<i64: 8, 16, 16>}, {transform_indices = @transform_1, window_bounds = array<i64: 8, 32>}, {transform_indices = @transform_2, window_bounds = array<i64: 8, 16>}, {pipeline_mode = #tpu.pipeline_mode<synchronous>, transform_indices = @transform_3, window_bounds = array<i64: 16, 32>}, {pipeline_mode = #tpu.pipeline_mode<synchronous>, transform_indices = @transform_4, window_bounds = array<i64: 1, 32>}, {transform_indices = @transform_5, window_bounds = array<i64: 8, 16>}, {transform_indices = @transform_6, window_bounds = array<i64: 8, 16>}]} {
    %c0 = arith.constant 0 : index
    %c0_0 = arith.constant 0 : index
    %c0_1 = arith.constant 0 : index
    %0 = vector.load %arg1[%c0, %c0_0, %c0_1] : memref<8x16x16xf32, #tpu.memory_space<vmem>>, vector<8x16x16xf32>
    %1 = vector.shape_cast %0 : vector<8x16x16xf32> to vector<128x16xf32>
    %c0_2 = arith.constant 0 : index
    %c0_3 = arith.constant 0 : index
    %2 = vector.load %arg4[%c0_2, %c0_3] : memref<16x32xf32, #tpu.memory_space<vmem>>, vector<16x32xf32>
    %cst = arith.constant dense<0.000000e+00> : vector<128x32xf32>
    %3 = tpu.matmul %1, %2, %cst {dimension_numbers = #tpu.dot_dimension_numbers<[1], [0], [0], [1], [0, 0, 1, 1], [], []>} : vector<128x16xf32>, vector<16x32xf32>, vector<128x32xf32> -> vector<128x32xf32>
    %4 = vector.shape_cast %3 : vector<128x32xf32> to vector<8x16x32xf32>
    %c0_4 = arith.constant 0 : index
    %c0_5 = arith.constant 0 : index
    %5 = vector.load %arg2[%c0_4, %c0_5] : memref<8x32xf32, #tpu.memory_space<vmem>>, vector<8x32xf32>
    %6 = vector.shape_cast %5 : vector<8x32xf32> to vector<8x1x32xf32>
    %7 = vector.broadcast %6 : vector<8x1x32xf32> to vector<8x16x32xf32>
    %8 = arith.addf %4, %7 : vector<8x16x32xf32>
    %9 = math.tanh %8 : vector<8x16x32xf32>
    %c0_6 = arith.constant 0 : index
    %c0_7 = arith.constant 0 : index
    %10 = vector.load %arg5[%c0_6, %c0_7] : memref<1x32xf32, #tpu.memory_space<vmem>>, vector<1x32xf32>
    %11 = vector.shape_cast %10 : vector<1x32xf32> to vector<1x1x32xf32>
    %12 = vector.broadcast %11 : vector<1x1x32xf32> to vector<8x16x32xf32>
    %13 = arith.mulf %9, %12 : vector<8x16x32xf32>
    %cst_8 = arith.constant dense<0.000000e+00> : vector<8x16xf32>
    %14 = vector.multi_reduction <add>, %13, %cst_8 [2] : vector<8x16x32xf32> to vector<8x16xf32>
    %c0_9 = arith.constant 0 : index
    %c0_10 = arith.constant 0 : index
    %15 = vector.load %arg3[%c0_9, %c0_10] : memref<8x16xf32, #tpu.memory_space<vmem>>, vector<8x16xf32>
    %cst_11 = arith.constant 1.000000e+00 : f32
    %16 = vector.broadcast %cst_11 : f32 to vector<8x16xf32>
    %17 = arith.cmpf oeq, %15, %16 : vector<8x16xf32>
    %cst_12 = arith.constant 2.000000e+00 : f32
    %18 = vector.broadcast %cst_12 : f32 to vector<8x16xf32>
    %19 = arith.mulf %18, %14 : vector<8x16xf32>
    %cst_13 = arith.constant -2.000000e-06 : f32
    %20 = vector.broadcast %cst_13 : f32 to vector<8x16xf32>
    %21 = arith.select %17, %20, %19 : vector<8x16xi1>, vector<8x16xf32>
    %cst_14 = arith.constant 2.000000e+00 : f32
    %22 = vector.broadcast %cst_14 : f32 to vector<8x16xf32>
    %23 = arith.cmpf oge, %15, %22 : vector<8x16xf32>
    %cst_15 = arith.constant -1.000000e+30 : f32
    %24 = vector.broadcast %cst_15 : f32 to vector<8x16xf32>
    %25 = arith.select %23, %24, %21 : vector<8x16xi1>, vector<8x16xf32>
    %cst_16 = arith.constant dense<0xFF800000> : vector<8xf32>
    %26 = vector.multi_reduction <maximumf>, %25, %cst_16 [1] : vector<8x16xf32> to vector<8xf32>
    %27 = vector.shape_cast %26 : vector<8xf32> to vector<8x1xf32>
    %28 = vector.broadcast %27 : vector<8x1xf32> to vector<8x16xf32>
    %29 = arith.subf %25, %28 : vector<8x16xf32>
    %30 = math.exp %29 : vector<8x16xf32>
    %cst_17 = arith.constant dense<0.000000e+00> : vector<8xf32>
    %31 = vector.multi_reduction <add>, %30, %cst_17 [1] : vector<8x16xf32> to vector<8xf32>
    %32 = vector.shape_cast %31 : vector<8xf32> to vector<8x1xf32>
    %33 = tpu.reciprocal %32 : vector<8x1xf32> -> vector<8x1xf32>
    %34 = vector.shape_cast %30 : vector<8x16xf32> to vector<8x16x1xf32>
    %35 = vector.broadcast %34 : vector<8x16x1xf32> to vector<8x16x16xf32>
    %36 = arith.mulf %35, %0 : vector<8x16x16xf32>
    %cst_18 = arith.constant dense<0.000000e+00> : vector<8x16xf32>
    %37 = vector.multi_reduction <add>, %36, %cst_18 [1] : vector<8x16x16xf32> to vector<8x16xf32>
    %38 = vector.broadcast %33 : vector<8x1xf32> to vector<8x16xf32>
    %39 = arith.mulf %37, %38 : vector<8x16xf32>
    %c0_19 = arith.constant 0 : index
    %c0_20 = arith.constant 0 : index
    %40 = vector.load %arg6[%c0_19, %c0_20] : memref<8x16xf32, #tpu.memory_space<vmem>>, vector<8x16xf32>
    tpu.vector_store %arg6[%c0_19, %c0_20], %39 {strides = array<i32>} : memref<8x16xf32, #tpu.memory_space<vmem>>, vector<8x16xf32>,
    %41 = vector.broadcast %33 : vector<8x1xf32> to vector<8x16xf32>
    %42 = arith.mulf %30, %41 : vector<8x16xf32>
    %c0_21 = arith.constant 0 : index
    %c0_22 = arith.constant 0 : index
    %43 = vector.load %arg7[%c0_21, %c0_22] : memref<8x16xf32, #tpu.memory_space<vmem>>, vector<8x16xf32>
    tpu.vector_store %arg7[%c0_21, %c0_22], %42 {strides = array<i32>} : memref<8x16xf32, #tpu.memory_space<vmem>>, vector<8x16xf32>,
    return
  }
  func.func @transform_0(%arg0: i32) -> (i32, i32, i32) {
    %c0_i32 = arith.constant 0 : i32
    %c0_i32_0 = arith.constant 0 : i32
    %c0_i32_1 = arith.constant 0 : i32
    return %arg0, %c0_i32, %c0_i32_0 : i32, i32, i32
  }
  func.func @transform_1(%arg0: i32) -> (i32, i32) {
    %c0_i32 = arith.constant 0 : i32
    %c0_i32_0 = arith.constant 0 : i32
    return %arg0, %c0_i32 : i32, i32
  }
  func.func @transform_2(%arg0: i32) -> (i32, i32) {
    %c0_i32 = arith.constant 0 : i32
    %c0_i32_0 = arith.constant 0 : i32
    return %arg0, %c0_i32 : i32, i32
  }
  func.func @transform_3(%arg0: i32) -> (i32, i32) {
    %c0_i32 = arith.constant 0 : i32
    %c0_i32_0 = arith.constant 0 : i32
    %c0_i32_1 = arith.constant 0 : i32
    return %c0_i32, %c0_i32_0 : i32, i32
  }
  func.func @transform_4(%arg0: i32) -> (i32, i32) {
    %c0_i32 = arith.constant 0 : i32
    %c0_i32_0 = arith.constant 0 : i32
    %c0_i32_1 = arith.constant 0 : i32
    return %c0_i32, %c0_i32_0 : i32, i32
  }
  func.func @transform_5(%arg0: i32) -> (i32, i32) {
    %c0_i32 = arith.constant 0 : i32
    %c0_i32_0 = arith.constant 0 : i32
    return %arg0, %c0_i32 : i32, i32
  }
  func.func @transform_6(%arg0: i32) -> (i32, i32) {
    %c0_i32 = arith.constant 0 : i32
    %c0_i32_0 = arith.constant 0 : i32
    return %arg0, %c0_i32 : i32, i32
  }
}

</mosaic_0001>

<llo_original>
// kernel: tpu_custom_call.1
$region0: #{tpu_custom_call.1}
  #allocation0 [shape = 'u32[]', space=smem, size = 0x4, offset = 0x4, fixed_abs, tag = 'smem constant byte address 0x4 - core index']
  #allocation1 [shape = 'u32[144,128]{1,0:T(1,128)}', space=vmem, size = 0x12000, scoped, tag = 'internal scratch']
  %s0 = inlined_call_operand.hbm [shape: f32[8,16,16], index: 0, kind: input, shape index: {}]
  %s1 = inlined_call_operand.hbm [shape: f32[8,32], index: 1, kind: input, shape index: {}]
  %s2 = inlined_call_operand.hbm [shape: f32[8,16], index: 2, kind: input, shape index: {}]
  %s3 = inlined_call_operand.hbm [shape: f32[16,32], index: 3, kind: input, shape index: {}]
  %s4 = inlined_call_operand.vmem [shape: f32[1,32], index: 4, kind: input, shape index: {}]
  %s5 = inlined_call_operand.hbm [shape: f32[8,16], index: 5, kind: output, shape index: {0}]
  %s6 = inlined_call_operand.hbm [shape: f32[8,16], index: 6, kind: output, shape index: {1}]
  %7 = xla_tuple %s5, %s6
  %s8 = sld [smem:[#allocation0]]
  $region54: #{tpu_custom_call.1} parent=0
    _
  %s10 = ssub.s32 1, %s8
  %s11 = scalar_select 0, %s10, %s8
  $region1: #{tpu_custom_call.1} parent=0
    #allocation2 [shape = 'u8[65536]{0}', space=vmem, size = 0x10000, scoped, tag = 'input window, operand 0, single buffered']
    #allocation3 [shape = 's32[1]{0}', space=sflag, size = 0x4, scoped, tag = 'scoped memory for tpu_custom_call.1']
    #allocation4 [shape = 's32[1]{0}', space=sflag, size = 0x4, scoped, tag = 'scoped memory for tpu_custom_call.1']
    #allocation5 [shape = 'u8[4096]{0}', space=vmem, size = 0x1000, scoped, tag = 'input window, operand 1, single buffered']
    #allocation6 [shape = 's32[1]{0}', space=sflag, size = 0x4, scoped, tag = 'scoped memory for tpu_custom_call.1']
    #allocation7 [shape = 'u8[4096]{0}', space=vmem, size = 0x1000, scoped, tag = 'input window, operand 2, single buffered']
    #allocation8 [shape = 'u8[8192]{0}', space=vmem, size = 0x2000, scoped, tag = 'input window, operand 3, single buffered']
    #allocation9 [shape = 's32[1]{0}', space=sflag, size = 0x4, scoped, tag = 'scoped memory for tpu_custom_call.1']
    #allocation10 [shape = 'u8[4096]{0}', space=vmem, size = 0x1000, scoped, tag = 'output window, operand 0, single buffered']
    #allocation11 [shape = 'u8[4096]{0}', space=vmem, size = 0x1000, scoped, tag = 'output window, operand 1, single buffered']
    #allocation12 [shape = 's32[1]{0}', space=sflag, size = 0x4, scoped, tag = 'scoped memory for tpu_custom_call.1']
    %12 = vsyncpa [#allocation3], 0
    %13 = vsyncpa [#allocation6], 0
    %14 = vsyncpa [#allocation9], 0
    %15 = vsyncpa [#allocation4], 0
    %16 = vsyncpa [#allocation12], 0
    // Predicated region
    $region2: #{tpu_custom_call.1} parent=1 // pred_check
      _
    $region3: #{tpu_custom_call.1} parent=1 // pred_check_branch
      %18 = sbr.rel (0) target = $region5
    $region4: #{tpu_custom_call.1} parent=1 // pred_region
      %s20 = ssub.s32 2048, 2048
      %21 = vsyncadd [#allocation3], %s20
      %s22 = sshll.u32 [#allocation2], 4
      %s23 = int_to_ptr.vmem [resolvable:$true] %s22
      %28 = dma.hbm_to_vmem [thread:$0]  %s0, 2048, %s23, [#allocation3], 128, 128, 8
    $region5: #{tpu_custom_call.1} parent=1 // pred_fallthru
      _
    // Predicated region
    $region6: #{tpu_custom_call.1} parent=1 // pred_check
      _
    $region7: #{tpu_custom_call.1} parent=1 // pred_check_branch
      %30 = sbr.rel (0) target = $region9
    $region8: #{tpu_custom_call.1} parent=1 // pred_region
      %s32 = ssub.s32 128, 128
      %33 = vsyncadd [#allocation6], %s32
      %s35 = sshll.u32 [#allocation5], 4
      %s36 = int_to_ptr.vmem [resolvable:$true] %s35
      %38 = dma.hbm_to_vmem [thread:$0]  %s1, 128, %s36, [#allocation6]
    $region9: #{tpu_custom_call.1} parent=1 // pred_fallthru
      _
    // Predicated region
    $region10: #{tpu_custom_call.1} parent=1 // pred_check
      _
    $region11: #{tpu_custom_call.1} parent=1 // pred_check_branch
      %40 = sbr.rel (0) target = $region13
    $region12: #{tpu_custom_call.1} parent=1 // pred_region
      %s42 = ssub.s32 128, 128
      %43 = vsyncadd [#allocation6], %s42
      %s45 = sshll.u32 [#allocation7], 4
      %s46 = int_to_ptr.vmem [resolvable:$true] %s45
      %48 = dma.hbm_to_vmem [thread:$0]  %s2, 128, %s46, [#allocation6]
    $region13: #{tpu_custom_call.1} parent=1 // pred_fallthru
      _
    // Predicated region
    $region14: #{tpu_custom_call.1} parent=1 // pred_check
      _
    $region15: #{tpu_custom_call.1} parent=1 // pred_check_branch
      %50 = sbr.rel (0) target = $region17
    $region16: #{tpu_custom_call.1} parent=1 // pred_region
      %s52 = ssub.s32 256, 256
      %53 = vsyncadd [#allocation9], %s52
      %s54 = sshll.u32 [#allocation8], 4
      %s55 = int_to_ptr.vmem [resolvable:$true] %s54
      %60 = dma.hbm_to_vmem [thread:$0]  %s3, 256, %s55, [#allocation9], 128, 128, 8
    $region17: #{tpu_custom_call.1} parent=1 // pred_fallthru
      _
    // Predicated region
    $region18: #{tpu_custom_call.1} parent=1 // pred_check
      _
    $region19: #{tpu_custom_call.1} parent=1 // pred_check_branch
      %62 = sbr.rel (0) target = $region21
    $region20: #{tpu_custom_call.1} parent=1 // pred_region
      _
    $region21: #{tpu_custom_call.1} parent=1 // pred_fallthru
      _
    // Predicated region
    $region22: #{tpu_custom_call.1} parent=1 // pred_check
      _
    $region23: #{tpu_custom_call.1} parent=1 // pred_check_branch
      %64 = sbr.rel (0) target = $region25
    $region24: #{tpu_custom_call.1} parent=1 // pred_region
      %65 = dma.done [#allocation3], 2048
    $region25: #{tpu_custom_call.1} parent=1 // pred_fallthru
      _
    // Predicated region
    $region26: #{tpu_custom_call.1} parent=1 // pred_check
      _
    $region27: #{tpu_custom_call.1} parent=1 // pred_check_branch
      %67 = sbr.rel (0) target = $region29
    $region28: #{tpu_custom_call.1} parent=1 // pred_region
      %68 = dma.done [#allocation6], 128
    $region29: #{tpu_custom_call.1} parent=1 // pred_fallthru
      _
    // Predicated region
    $region30: #{tpu_custom_call.1} parent=1 // pred_check
      _
    $region31: #{tpu_custom_call.1} parent=1 // pred_check_branch
      %70 = sbr.rel (0) target = $region33
    $region32: #{tpu_custom_call.1} parent=1 // pred_region
      %71 = dma.done [#allocation6], 128
    $region33: #{tpu_custom_call.1} parent=1 // pred_fallthru
      _
    // Predicated region
    $region34: #{tpu_custom_call.1} parent=1 // pred_check
      _
    $region35: #{tpu_custom_call.1} parent=1 // pred_check_branch
      %73 = sbr.rel (0) target = $region37
    $region36: #{tpu_custom_call.1} parent=1 // pred_region
      %74 = dma.done [#allocation9], 256
    $region37: #{tpu_custom_call.1} parent=1 // pred_fallthru
      _
    %v75 = vld [vmem:[#allocation2] sm:$0xff]
    %v76 = vld [vmem:[#allocation2 + $0x8] sm:$0xff]
    %v77 = vld [vmem:[#allocation2 + $0x10] sm:$0xff]
    %v78 = vld [vmem:[#allocation2 + $0x18] sm:$0xff]
    %v79 = vld [vmem:[#allocation2 + $0x20] sm:$0xff]
    %v80 = vld [vmem:[#allocation2 + $0x28] sm:$0xff]
    %v81 = vld [vmem:[#allocation2 + $0x30] sm:$0xff]
    %v82 = vld [vmem:[#allocation2 + $0x38] sm:$0xff]
    %v83 = vld [vmem:[#allocation2 + $0x40] sm:$0xff]
    %v84 = vld [vmem:[#allocation2 + $0x48] sm:$0xff]
    %v85 = vld [vmem:[#allocation2 + $0x50] sm:$0xff]
    %v86 = vld [vmem:[#allocation2 + $0x58] sm:$0xff]
    %v87 = vld [vmem:[#allocation2 + $0x60] sm:$0xff]
    %v88 = vld [vmem:[#allocation2 + $0x68] sm:$0xff]
    %v89 = vld [vmem:[#allocation2 + $0x70] sm:$0xff]
    %v90 = vld [vmem:[#allocation2 + $0x78] sm:$0xff]
    %v91 = vld [vmem:[#allocation8] sm:$0xff]
    %v92 = vld [vmem:[#allocation8 + $0x8] sm:$0xff]
    %vm93 = vcmask 130048
    %v95 = vsel %vm93, %v75, 0
    %v98 = vsel %vm93, %v76, 0
    %v101 = vsel %vm93, %v77, 0
    %v104 = vsel %vm93, %v78, 0
    %v107 = vsel %vm93, %v79, 0
    %v110 = vsel %vm93, %v80, 0
    %v113 = vsel %vm93, %v81, 0
    %v116 = vsel %vm93, %v82, 0
    %v119 = vsel %vm93, %v83, 0
    %v122 = vsel %vm93, %v84, 0
    %v125 = vsel %vm93, %v85, 0
    %v128 = vsel %vm93, %v86, 0
    %v131 = vsel %vm93, %v87, 0
    %v134 = vsel %vm93, %v88, 0
    %v137 = vsel %vm93, %v89, 0
    %v140 = vsel %vm93, %v90, 0
    %142 = vmatprep.subr.mxu0 0.0
    %143 = vmatpush1.msra.mxu0 0.0
    %144 = vmatprep.subr.mxu0 0.0
    %145 = vmatpush1.msra.mxu0 0.0
    %146 = vmatprep.subr.mxu0 0.0
    %147 = vmatpush1.msra.mxu0 0.0
    %148 = vmatprep.subr.mxu0 0.0
    %149 = vmatpush1.msra.mxu0 0.0
    %150 = vmatprep.subr.mxu0 0.0
    %151 = vmatpush1.msra.mxu0 0.0
    %152 = vmatprep.subr.mxu0 0.0
    %153 = vmatpush1.msra.mxu0 0.0
    %154 = vmatprep.subr.mxu0 0.0
    %155 = vmatpush1.msra.mxu0 0.0
    %156 = vmatprep.subr.mxu0 0.0
    %157 = vmatpush1.msra.mxu0 0.0
    %158 = vmatprep.subr.mxu0 0.0
    %159 = vmatpush1.msra.mxu0 0.0
    %160 = vmatprep.subr.mxu0 0.0
    %161 = vmatpush1.msra.mxu0 0.0
    %162 = vmatprep.subr.mxu0 0.0
    %163 = vmatpush1.msra.mxu0 0.0
    %164 = vmatprep.subr.mxu0 0.0
    %165 = vmatpush1.msra.mxu0 0.0
    %166 = vmatprep.subr.mxu0 0.0
    %167 = vmatpush1.msra.mxu0 0.0
    %168 = vmatprep.subr.mxu0 0.0
    %169 = vmatpush1.msra.mxu0 0.0
    %170 = vmatprep.subr.mxu0 0.0
    %171 = vmatpush1.msra.mxu0 %v92
    %172 = vmatprep.subr.mxu0 0.0
    %173 = vmatpush1.msra.mxu0 %v91
    %174 = vmatprep.subr.mxu0 0.0
    %175 = vmatpush2.msra.mxu0 0.0
    %176 = vmatprep.subr.mxu0 0.0
    %177 = vmatpush2.msra.mxu0 0.0
    %178 = vmatprep.subr.mxu0 0.0
    %179 = vmatpush2.msra.mxu0 0.0
    %180 = vmatprep.subr.mxu0 0.0
    %181 = vmatpush2.msra.mxu0 0.0
    %182 = vmatprep.subr.mxu0 0.0
    %183 = vmatpush2.msra.mxu0 0.0
    %184 = vmatprep.subr.mxu0 0.0
    %185 = vmatpush2.msra.mxu0 0.0
    %186 = vmatprep.subr.mxu0 0.0
    %187 = vmatpush2.msra.mxu0 0.0
    %188 = vmatprep.subr.mxu0 0.0
    %189 = vmatpush2.msra.mxu0 0.0
    %190 = vmatprep.subr.mxu0 0.0
    %191 = vmatpush2.msra.mxu0 0.0
    %192 = vmatprep.subr.mxu0 0.0
    %193 = vmatpush2.msra.mxu0 0.0
    %194 = vmatprep.subr.mxu0 0.0
    %195 = vmatpush2.msra.mxu0 0.0
    %196 = vmatprep.subr.mxu0 0.0
    %197 = vmatpush2.msra.mxu0 0.0
    %198 = vmatprep.subr.mxu0 0.0
    %199 = vmatpush2.msra.mxu0 0.0
    %200 = vmatprep.subr.mxu0 0.0
    %201 = vmatpush2.msra.mxu0 0.0
    %202 = vmatprep.subr.mxu0 0.0
    %203 = vmatpush2.msra.mxu0 0.0
    %204 = vmatprep.subr.mxu0 0.0
    %205 = vmatpush2.msra.mxu0 0.0
    %206 = vmatprep.mubr.f32.mxu0 0.0
    %207 = vmatmul.mubr.f32.gmra.mxu0 %v95
    %v208 = vpop.f32.mrf.mxu0
    %v209 = vadd.f32 0.0, %v208
    %v210 = vpop.f32.mrf.mxu0
    %211 = vmatprep.mubr.f32.mxu0 0.0
    %212 = vmatmul.mubr.f32.gmra.mxu0 %v98
    %v213 = vpop.f32.mrf.mxu0
    %v214 = vadd.f32 0.0, %v213
    %v215 = vpop.f32.mrf.mxu0
    %216 = vmatprep.mubr.f32.mxu0 0.0
    %217 = vmatmul.mubr.f32.gmra.mxu0 %v101
    %v218 = vpop.f32.mrf.mxu0
    %v219 = vadd.f32 0.0, %v218
    %v220 = vpop.f32.mrf.mxu0
    %221 = vmatprep.mubr.f32.mxu0 0.0
    %222 = vmatmul.mubr.f32.gmra.mxu0 %v104
    %v223 = vpop.f32.mrf.mxu0
    %v224 = vadd.f32 0.0, %v223
    %v225 = vpop.f32.mrf.mxu0
    %226 = vmatprep.mubr.f32.mxu0 0.0
    %227 = vmatmul.mubr.f32.gmra.mxu0 %v107
    %v228 = vpop.f32.mrf.mxu0
    %v229 = vadd.f32 0.0, %v228
    %v230 = vpop.f32.mrf.mxu0
    %231 = vmatprep.mubr.f32.mxu0 0.0
    %232 = vmatmul.mubr.f32.gmra.mxu0 %v110
    %v233 = vpop.f32.mrf.mxu0
    %v234 = vadd.f32 0.0, %v233
    %v235 = vpop.f32.mrf.mxu0
    %236 = vmatprep.mubr.f32.mxu0 0.0
    %237 = vmatmul.mubr.f32.gmra.mxu0 %v113
    %v238 = vpop.f32.mrf.mxu0
    %v239 = vadd.f32 0.0, %v238
    %v240 = vpop.f32.mrf.mxu0
    %241 = vmatprep.mubr.f32.mxu0 0.0
    %242 = vmatmul.mubr.f32.gmra.mxu0 %v116
    %v243 = vpop.f32.mrf.mxu0
    %v244 = vadd.f32 0.0, %v243
    %v245 = vpop.f32.mrf.mxu0
    %246 = vmatprep.mubr.f32.mxu0 0.0
    %247 = vmatmul.mubr.f32.gmra.mxu0 %v119
    %v248 = vpop.f32.mrf.mxu0
    %v249 = vadd.f32 0.0, %v248
    %v250 = vpop.f32.mrf.mxu0
    %251 = vmatprep.mubr.f32.mxu0 0.0
    %252 = vmatmul.mubr.f32.gmra.mxu0 %v122
    %v253 = vpop.f32.mrf.mxu0
    %v254 = vadd.f32 0.0, %v253
    %v255 = vpop.f32.mrf.mxu0
    %256 = vmatprep.mubr.f32.mxu0 0.0
    %257 = vmatmul.mubr.f32.gmra.mxu0 %v125
    %v258 = vpop.f32.mrf.mxu0
    %v259 = vadd.f32 0.0, %v258
    %v260 = vpop.f32.mrf.mxu0
    %261 = vmatprep.mubr.f32.mxu0 0.0
    %262 = vmatmul.mubr.f32.gmra.mxu0 %v128
    %v263 = vpop.f32.mrf.mxu0
    %v264 = vadd.f32 0.0, %v263
    %v265 = vpop.f32.mrf.mxu0
    %266 = vmatprep.mubr.f32.mxu0 0.0
    %267 = vmatmul.mubr.f32.gmra.mxu0 %v131
    %v268 = vpop.f32.mrf.mxu0
    %v269 = vadd.f32 0.0, %v268
    %v270 = vpop.f32.mrf.mxu0
    %271 = vmatprep.mubr.f32.mxu0 0.0
    %272 = vmatmul.mubr.f32.gmra.mxu0 %v134
    %v273 = vpop.f32.mrf.mxu0
    %v274 = vadd.f32 0.0, %v273
    %v275 = vpop.f32.mrf.mxu0
    %276 = vmatprep.mubr.f32.mxu0 0.0
    %277 = vmatmul.mubr.f32.gmra.mxu0 %v137
    %v278 = vpop.f32.mrf.mxu0
    %v279 = vadd.f32 0.0, %v278
    %v280 = vpop.f32.mrf.mxu0
    %281 = vmatprep.mubr.f32.mxu0 0.0
    %282 = vmatmul.mubr.f32.gmra.mxu0 %v140
    %v283 = vpop.f32.mrf.mxu0
    %v284 = vadd.f32 0.0, %v283
    %v285 = vpop.f32.mrf.mxu0
    %286 = vdwg.mxu0
    %v287 = vld [vmem:[#allocation5] sm:$0xff]
    %v289 = vcombine.high %v287, %v287
    %v291 = vunpack.c.l.s4 1966171168
    %v292 = vunpack.c.0.s8 %v291
    %v293 = vlaneseq
    %v294 = vshrl.u32 %v293, 7
    %v295 = vsub.s32 %v292, %v294
    %v296 = vrot.slane %v287, %v295
    %v298 = vunpack.c.l.s4 1966171168
    %v299 = vunpack.c.0.s8 %v298
    %v300 = vlaneseq
    %v301 = vshrl.u32 %v300, 7
    %v302 = vsub.s32 %v299, %v301
    %v303 = vrot.slane %v289, %v302
    %v304 = vcombine.high %v296, %v296
    %v305 = vcombine.high %v303, %v303
    %v307 = vunpack.c.l.s4 1966171168
    %v308 = vunpack.c.0.s8 %v307
    %v309 = vlaneseq
    %v310 = vshrl.u32 %v309, 7
    %v311 = vsub.s32 %v308, %v310
    %v312 = vrot.slane %v296, %v311
    %v314 = vunpack.c.l.s4 1966171168
    %v315 = vunpack.c.0.s8 %v314
    %v316 = vlaneseq
    %v317 = vshrl.u32 %v316, 7
    %v318 = vsub.s32 %v315, %v317
    %v319 = vrot.slane %v303, %v318
    %v321 = vunpack.c.l.s4 1966171168
    %v322 = vunpack.c.0.s8 %v321
    %v323 = vlaneseq
    %v324 = vshrl.u32 %v323, 7
    %v325 = vsub.s32 %v322, %v324
    %v326 = vrot.slane %v304, %v325
    %v328 = vunpack.c.l.s4 1966171168
    %v329 = vunpack.c.0.s8 %v328
    %v330 = vlaneseq
    %v331 = vshrl.u32 %v330, 7
    %v332 = vsub.s32 %v329, %v331
    %v333 = vrot.slane %v305, %v332
    %v334 = vcombine.high %v312, %v312
    %v335 = vcombine.high %v319, %v319
    %v336 = vcombine.high %v326, %v326
    %v337 = vcombine.high %v333, %v333
    %v338 = vlaneseq
    %v339 = vshrl.u32 %v338, 7
    %v340 = vsub.s32 0, %v339
    %v341 = vrot.slane %v312, %v340
    %v342 = vlaneseq
    %v343 = vshrl.u32 %v342, 7
    %v344 = vsub.s32 0, %v343
    %v345 = vrot.slane %v326, %v344
    %v346 = vlaneseq
    %v347 = vshrl.u32 %v346, 7
    %v348 = vsub.s32 0, %v347
    %v349 = vrot.slane %v334, %v348
    %v350 = vlaneseq
    %v351 = vshrl.u32 %v350, 7
    %v352 = vsub.s32 0, %v351
    %v353 = vrot.slane %v336, %v352
    %v354 = vlaneseq
    %v355 = vshrl.u32 %v354, 7
    %v356 = vsub.s32 0, %v355
    %v357 = vrot.slane %v319, %v356
    %v358 = vlaneseq
    %v359 = vshrl.u32 %v358, 7
    %v360 = vsub.s32 0, %v359
    %v361 = vrot.slane %v333, %v360
    %v362 = vlaneseq
    %v363 = vshrl.u32 %v362, 7
    %v364 = vsub.s32 0, %v363
    %v365 = vrot.slane %v335, %v364
    %v366 = vlaneseq
    %v367 = vshrl.u32 %v366, 7
    %v368 = vsub.s32 0, %v367
    %v369 = vrot.slane %v337, %v368
    %v378 = vadd.f32 %v209, %v341
    %v379 = vadd.f32 %v214, %v341
    %v380 = vadd.f32 %v219, %v345
    %v381 = vadd.f32 %v224, %v345
    %v382 = vadd.f32 %v229, %v349
    %v383 = vadd.f32 %v234, %v349
    %v384 = vadd.f32 %v239, %v353
    %v385 = vadd.f32 %v244, %v353
    %v386 = vadd.f32 %v249, %v357
    %v387 = vadd.f32 %v254, %v357
    %v388 = vadd.f32 %v259, %v361
    %v389 = vadd.f32 %v264, %v361
    %v390 = vadd.f32 %v269, %v365
    %v391 = vadd.f32 %v274, %v365
    %v392 = vadd.f32 %v279, %v369
    %v393 = vadd.f32 %v284, %v369
    %v394 = vtanh.pop %v378
    %v395 = vtanh.pop %v379
    %v396 = vtanh.pop %v380
    %v397 = vtanh.pop %v381
    %v398 = vtanh.pop %v382
    %v399 = vtanh.pop %v383
    %v400 = vtanh.pop %v384
    %v401 = vtanh.pop %v385
    %v402 = vtanh.pop %v386
    %v403 = vtanh.pop %v387
    %v404 = vtanh.pop %v388
    %v405 = vtanh.pop %v389
    %v406 = vtanh.pop %v390
    %v407 = vtanh.pop %v391
    %v408 = vtanh.pop %v392
    %v409 = vtanh.pop %v393
    %v410 = vld [vmem:[%s4] sm:$0x1]
    %v412 = vlaneseq
    %v413 = vshrl.u32 %v412, 7
    %v414 = vsub.s32 0, %v413
    %v415 = vrot.slane %v410, %v414
    %v417 = vmul.f32 %v394, %v415
    %v418 = vmul.f32 %v395, %v415
    %v419 = vmul.f32 %v396, %v415
    %v420 = vmul.f32 %v397, %v415
    %v421 = vmul.f32 %v398, %v415
    %v422 = vmul.f32 %v399, %v415
    %v423 = vmul.f32 %v400, %v415
    %v424 = vmul.f32 %v401, %v415
    %v425 = vmul.f32 %v402, %v415
    %v426 = vmul.f32 %v403, %v415
    %v427 = vmul.f32 %v404, %v415
    %v428 = vmul.f32 %v405, %v415
    %v429 = vmul.f32 %v406, %v415
    %v430 = vmul.f32 %v407, %v415
    %v431 = vmul.f32 %v408, %v415
    %v432 = vmul.f32 %v409, %v415
    %vm433 = vcmask 261120
    %v434 = vsel %vm433, %v417, 0.0
    %435 = vadd.xlane.f32.xlu0 %v434
    %v436 = vpop.xlane.xlu0 %435
    %v437 = vsel %vm433, %v418, 0.0
    %438 = vadd.xlane.f32.xlu0 %v437
    %v439 = vpop.xlane.xlu0 %438
    %v440 = vsel %vm433, %v419, 0.0
    %441 = vadd.xlane.f32.xlu0 %v440
    %v442 = vpop.xlane.xlu0 %441
    %v443 = vsel %vm433, %v420, 0.0
    %444 = vadd.xlane.f32.xlu0 %v443
    %v445 = vpop.xlane.xlu0 %444
    %v446 = vsel %vm433, %v421, 0.0
    %447 = vadd.xlane.f32.xlu0 %v446
    %v448 = vpop.xlane.xlu0 %447
    %v449 = vsel %vm433, %v422, 0.0
    %450 = vadd.xlane.f32.xlu0 %v449
    %v451 = vpop.xlane.xlu0 %450
    %v452 = vsel %vm433, %v423, 0.0
    %453 = vadd.xlane.f32.xlu0 %v452
    %v454 = vpop.xlane.xlu0 %453
    %v455 = vsel %vm433, %v424, 0.0
    %456 = vadd.xlane.f32.xlu0 %v455
    %v457 = vpop.xlane.xlu0 %456
    %v458 = vsel %vm433, %v425, 0.0
    %459 = vadd.xlane.f32.xlu0 %v458
    %v460 = vpop.xlane.xlu0 %459
    %v461 = vsel %vm433, %v426, 0.0
    %462 = vadd.xlane.f32.xlu0 %v461
    %v463 = vpop.xlane.xlu0 %462
    %v464 = vsel %vm433, %v427, 0.0
    %465 = vadd.xlane.f32.xlu0 %v464
    %v466 = vpop.xlane.xlu0 %465
    %v467 = vsel %vm433, %v428, 0.0
    %468 = vadd.xlane.f32.xlu0 %v467
    %v469 = vpop.xlane.xlu0 %468
    %v470 = vsel %vm433, %v429, 0.0
    %471 = vadd.xlane.f32.xlu0 %v470
    %v472 = vpop.xlane.xlu0 %471
    %v473 = vsel %vm433, %v430, 0.0
    %474 = vadd.xlane.f32.xlu0 %v473
    %v475 = vpop.xlane.xlu0 %474
    %v476 = vsel %vm433, %v431, 0.0
    %477 = vadd.xlane.f32.xlu0 %v476
    %v478 = vpop.xlane.xlu0 %477
    %v479 = vsel %vm433, %v432, 0.0
    %480 = vadd.xlane.f32.xlu0 %v479
    %v481 = vpop.xlane.xlu0 %480
    %v482 = vld [vmem:[#allocation7] sm:$0xff]
    %vm483 = vcmp.eq.f32.partialorder %v482, 1.0
    %v484 = vmul.f32 %v436, 2.0
    %v485 = vmul.f32 %v439, 2.0
    %v486 = vmul.f32 %v442, 2.0
    %v487 = vmul.f32 %v445, 2.0
    %v488 = vmul.f32 %v448, 2.0
    %v489 = vmul.f32 %v451, 2.0
    %v490 = vmul.f32 %v454, 2.0
    %v491 = vmul.f32 %v457, 2.0
    %v492 = vmul.f32 %v460, 2.0
    %v493 = vmul.f32 %v463, 2.0
    %v494 = vmul.f32 %v466, 2.0
    %v495 = vmul.f32 %v469, 2.0
    %v496 = vmul.f32 %v472, 2.0
    %v497 = vmul.f32 %v475, 2.0
    %v498 = vmul.f32 %v478, 2.0
    %v499 = vmul.f32 %v481, 2.0
    %v516 = vlaneseq
    %v517 = vand.u32 %v516, 127
    %v518 = vlaneseq
    %v519 = vshrl.u32 %v518, 7
    %v520 = vsub.s32 %v517, %v519
    %v521 = vrot.slane %v484, %v520
    %v522 = vadd.s32 %v517, 4294967288
    %v523 = vlaneseq
    %v524 = vshrl.u32 %v523, 7
    %v525 = vsub.s32 %v522, %v524
    %v526 = vrot.slane %v485, %v525
    %vm527 = vcmask 130112
    %v528 = vsel %vm527, %v526, %v521
    %v529 = vlaneseq
    %v530 = vshrl.u32 %v529, 7
    %v531 = vsub.s32 %v517, %v530
    %v532 = vrot.slane %v486, %v531
    %v533 = vlaneseq
    %v534 = vshrl.u32 %v533, 7
    %v535 = vsub.s32 %v522, %v534
    %v536 = vrot.slane %v487, %v535
    %v537 = vsel %vm527, %v536, %v532
    %v538 = vlaneseq
    %v539 = vshrl.u32 %v538, 7
    %v540 = vsub.s32 %v517, %v539
    %v541 = vrot.slane %v488, %v540
    %v542 = vlaneseq
    %v543 = vshrl.u32 %v542, 7
    %v544 = vsub.s32 %v522, %v543
    %v545 = vrot.slane %v489, %v544
    %v546 = vsel %vm527, %v545, %v541
    %v547 = vlaneseq
    %v548 = vshrl.u32 %v547, 7
    %v549 = vsub.s32 %v517, %v548
    %v550 = vrot.slane %v490, %v549
    %v551 = vlaneseq
    %v552 = vshrl.u32 %v551, 7
    %v553 = vsub.s32 %v522, %v552
    %v554 = vrot.slane %v491, %v553
    %v555 = vsel %vm527, %v554, %v550
    %v556 = vlaneseq
    %v557 = vshrl.u32 %v556, 7
    %v558 = vsub.s32 %v517, %v557
    %v559 = vrot.slane %v492, %v558
    %v560 = vlaneseq
    %v561 = vshrl.u32 %v560, 7
    %v562 = vsub.s32 %v522, %v561
    %v563 = vrot.slane %v493, %v562
    %v564 = vsel %vm527, %v563, %v559
    %v565 = vlaneseq
    %v566 = vshrl.u32 %v565, 7
    %v567 = vsub.s32 %v517, %v566
    %v568 = vrot.slane %v494, %v567
    %v569 = vlaneseq
    %v570 = vshrl.u32 %v569, 7
    %v571 = vsub.s32 %v522, %v570
    %v572 = vrot.slane %v495, %v571
    %v573 = vsel %vm527, %v572, %v568
    %v574 = vlaneseq
    %v575 = vshrl.u32 %v574, 7
    %v576 = vsub.s32 %v517, %v575
    %v577 = vrot.slane %v496, %v576
    %v578 = vlaneseq
    %v579 = vshrl.u32 %v578, 7
    %v580 = vsub.s32 %v522, %v579
    %v581 = vrot.slane %v497, %v580
    %v582 = vsel %vm527, %v581, %v577
    %v583 = vlaneseq
    %v584 = vshrl.u32 %v583, 7
    %v585 = vsub.s32 %v517, %v584
    %v586 = vrot.slane %v498, %v585
    %v587 = vlaneseq
    %v588 = vshrl.u32 %v587, 7
    %v589 = vsub.s32 %v522, %v588
    %v590 = vrot.slane %v499, %v589
    %v591 = vsel %vm527, %v590, %v586
    %vm592 = vcmask 1041409
    %v593 = vsel %vm592, %v537, %v528
    %vm594 = vcmask 1042434
    %v595 = vsel %vm594, %v546, %v593
    %vm596 = vcmask 1043459
    %v597 = vsel %vm596, %v555, %v595
    %vm598 = vcmask 1044484
    %v599 = vsel %vm598, %v564, %v597
    %vm600 = vcmask 1045509
    %v601 = vsel %vm600, %v573, %v599
    %vm602 = vcmask 1046534
    %v603 = vsel %vm602, %v582, %v601
    %vm604 = vcmask 1047559
    %v605 = vsel %vm604, %v591, %v603
    %v607 = vsel %vm483, -2e-06, %v605
    %vm608 = vcmp.ge.f32.partialorder %v482, 2.0
    %v609 = vsel %vm608, -1e+30, %v607
    %v610 = vsel %vm93, %v609, -inf
    %611 = vmax.xlane.f32.xlu0 %v610
    %v612 = vpop.xlane.xlu0 %611
    %v613 = vsub.f32 %v609, %v612
    %v614 = vmul.f32 %v613, 1.442695
    %v615 = vpow.pop %v614
    %v616 = vsel %vm93, %v615, 0.0
    %617 = vadd.xlane.f32.xlu0 %v616
    %v618 = vpop.xlane.xlu0 %617
    %v619 = vrcp.pop %v618
    %v620 = vlaneseq
    %v621 = vshrl.u32 %v620, 7
    %v622 = vsub.s32 0, %v621
    %v623 = vrot.slane %v615, %v622
    %625 = vbcast.lane.b32.xlu0 %v623, 256
    %v626 = vpop.permute.xlu0 %625
    %s628 = sor.u32 256, 8
    %629 = vbcast.lane.b32.xlu0 %v623, %s628
    %v630 = vpop.permute.xlu0 %629
    %v631 = vlaneseq
    %v632 = vshrl.u32 %v631, 7
    %v633 = vsub.s32 1, %v632
    %v634 = vrot.slane %v615, %v633
    %636 = vbcast.lane.b32.xlu0 %v634, 256
    %v637 = vpop.permute.xlu0 %636
    %s639 = sor.u32 256, 8
    %640 = vbcast.lane.b32.xlu0 %v634, %s639
    %v641 = vpop.permute.xlu0 %640
    %v642 = vlaneseq
    %v643 = vshrl.u32 %v642, 7
    %v644 = vsub.s32 2, %v643
    %v645 = vrot.slane %v615, %v644
    %647 = vbcast.lane.b32.xlu0 %v645, 256
    %v648 = vpop.permute.xlu0 %647
    %s650 = sor.u32 256, 8
    %651 = vbcast.lane.b32.xlu0 %v645, %s650
    %v652 = vpop.permute.xlu0 %651
    %v653 = vlaneseq
    %v654 = vshrl.u32 %v653, 7
    %v655 = vsub.s32 3, %v654
    %v656 = vrot.slane %v615, %v655
    %658 = vbcast.lane.b32.xlu0 %v656, 256
    %v659 = vpop.permute.xlu0 %658
    %s661 = sor.u32 256, 8
    %662 = vbcast.lane.b32.xlu0 %v656, %s661
    %v663 = vpop.permute.xlu0 %662
    %v664 = vlaneseq
    %v665 = vshrl.u32 %v664, 7
    %v666 = vsub.s32 4, %v665
    %v667 = vrot.slane %v615, %v666
    %669 = vbcast.lane.b32.xlu0 %v667, 256
    %v670 = vpop.permute.xlu0 %669
    %s672 = sor.u32 256, 8
    %673 = vbcast.lane.b32.xlu0 %v667, %s672
    %v674 = vpop.permute.xlu0 %673
    %v675 = vlaneseq
    %v676 = vshrl.u32 %v675, 7
    %v677 = vsub.s32 5, %v676
    %v678 = vrot.slane %v615, %v677
    %680 = vbcast.lane.b32.xlu0 %v678, 256
    %v681 = vpop.permute.xlu0 %680
    %s683 = sor.u32 256, 8
    %684 = vbcast.lane.b32.xlu0 %v678, %s683
    %v685 = vpop.permute.xlu0 %684
    %v686 = vlaneseq
    %v687 = vshrl.u32 %v686, 7
    %v688 = vsub.s32 6, %v687
    %v689 = vrot.slane %v615, %v688
    %691 = vbcast.lane.b32.xlu0 %v689, 256
    %v692 = vpop.permute.xlu0 %691
    %s694 = sor.u32 256, 8
    %695 = vbcast.lane.b32.xlu0 %v689, %s694
    %v696 = vpop.permute.xlu0 %695
    %v697 = vlaneseq
    %v698 = vshrl.u32 %v697, 7
    %v699 = vsub.s32 7, %v698
    %v700 = vrot.slane %v615, %v699
    %702 = vbcast.lane.b32.xlu0 %v700, 256
    %v703 = vpop.permute.xlu0 %702
    %s705 = sor.u32 256, 8
    %706 = vbcast.lane.b32.xlu0 %v700, %s705
    %v707 = vpop.permute.xlu0 %706
    %v708 = vmul.f32 %v626, %v75
    %v709 = vmul.f32 %v630, %v76
    %v710 = vmul.f32 %v637, %v77
    %v711 = vmul.f32 %v641, %v78
    %v712 = vmul.f32 %v648, %v79
    %v713 = vmul.f32 %v652, %v80
    %v714 = vmul.f32 %v659, %v81
    %v715 = vmul.f32 %v663, %v82
    %v716 = vmul.f32 %v670, %v83
    %v717 = vmul.f32 %v674, %v84
    %v718 = vmul.f32 %v681, %v85
    %v719 = vmul.f32 %v685, %v86
    %v720 = vmul.f32 %v692, %v87
    %v721 = vmul.f32 %v696, %v88
    %v722 = vmul.f32 %v703, %v89
    %v723 = vmul.f32 %v707, %v90
    %v724 = vsel %vm93, %v708, 0.0
    %v725 = vsel %vm93, %v709, 0.0
    %v726 = vadd.f32 %v724, %v725
    %v727 = vrot.slane %v726, 4
    %v728 = vadd.f32 %v726, %v727
    %v729 = vrot.slane %v728, 2
    %v730 = vadd.f32 %v728, %v729
    %v731 = vrot.slane %v730, 1
    %v732 = vadd.f32 %v730, %v731
    %v733 = vsel %vm93, %v710, 0.0
    %v734 = vsel %vm93, %v711, 0.0
    %v735 = vadd.f32 %v733, %v734
    %v736 = vrot.slane %v735, 4
    %v737 = vadd.f32 %v735, %v736
    %v738 = vrot.slane %v737, 2
    %v739 = vadd.f32 %v737, %v738
    %v740 = vrot.slane %v739, 1
    %v741 = vadd.f32 %v739, %v740
    %v742 = vsel %vm93, %v712, 0.0
    %v743 = vsel %vm93, %v713, 0.0
    %v744 = vadd.f32 %v742, %v743
    %v745 = vrot.slane %v744, 4
    %v746 = vadd.f32 %v744, %v745
    %v747 = vrot.slane %v746, 2
    %v748 = vadd.f32 %v746, %v747
    %v749 = vrot.slane %v748, 1
    %v750 = vadd.f32 %v748, %v749
    %v751 = vsel %vm93, %v714, 0.0
    %v752 = vsel %vm93, %v715, 0.0
    %v753 = vadd.f32 %v751, %v752
    %v754 = vrot.slane %v753, 4
    %v755 = vadd.f32 %v753, %v754
    %v756 = vrot.slane %v755, 2
    %v757 = vadd.f32 %v755, %v756
    %v758 = vrot.slane %v757, 1
    %v759 = vadd.f32 %v757, %v758
    %v760 = vsel %vm93, %v716, 0.0
    %v761 = vsel %vm93, %v717, 0.0
    %v762 = vadd.f32 %v760, %v761
    %v763 = vrot.slane %v762, 4
    %v764 = vadd.f32 %v762, %v763
    %v765 = vrot.slane %v764, 2
    %v766 = vadd.f32 %v764, %v765
    %v767 = vrot.slane %v766, 1
    %v768 = vadd.f32 %v766, %v767
    %v769 = vsel %vm93, %v718, 0.0
    %v770 = vsel %vm93, %v719, 0.0
    %v771 = vadd.f32 %v769, %v770
    %v772 = vrot.slane %v771, 4
    %v773 = vadd.f32 %v771, %v772
    %v774 = vrot.slane %v773, 2
    %v775 = vadd.f32 %v773, %v774
    %v776 = vrot.slane %v775, 1
    %v777 = vadd.f32 %v775, %v776
    %v778 = vsel %vm93, %v720, 0.0
    %v779 = vsel %vm93, %v721, 0.0
    %v780 = vadd.f32 %v778, %v779
    %v781 = vrot.slane %v780, 4
    %v782 = vadd.f32 %v780, %v781
    %v783 = vrot.slane %v782, 2
    %v784 = vadd.f32 %v782, %v783
    %v785 = vrot.slane %v784, 1
    %v786 = vadd.f32 %v784, %v785
    %v787 = vsel %vm93, %v722, 0.0
    %v788 = vsel %vm93, %v723, 0.0
    %v789 = vadd.f32 %v787, %v788
    %v790 = vrot.slane %v789, 4
    %v791 = vadd.f32 %v789, %v790
    %v792 = vrot.slane %v791, 2
    %v793 = vadd.f32 %v791, %v792
    %v794 = vrot.slane %v793, 1
    %v795 = vadd.f32 %v793, %v794
    %v797 = vrot.slane %v619, 1
    %v798 = vrot.slane %v619, 2
    %v799 = vrot.slane %v619, 3
    %v800 = vrot.slane %v619, 4
    %v801 = vrot.slane %v619, 5
    %v802 = vrot.slane %v619, 6
    %v803 = vrot.slane %v619, 7
    %v812 = vmul.f32 %v732, %v619
    %v813 = vmul.f32 %v741, %v797
    %v814 = vmul.f32 %v750, %v798
    %v815 = vmul.f32 %v759, %v799
    %v816 = vmul.f32 %v768, %v800
    %v817 = vmul.f32 %v777, %v801
    %v818 = vmul.f32 %v786, %v802
    %v819 = vmul.f32 %v795, %v803
    %v828 = vrot.slane %v813, 7
    %v829 = vsel %vm592, %v828, %v812
    %v830 = vrot.slane %v814, 6
    %v831 = vsel %vm594, %v830, %v829
    %v832 = vrot.slane %v815, 5
    %v833 = vsel %vm596, %v832, %v831
    %v834 = vrot.slane %v816, 4
    %v835 = vsel %vm598, %v834, %v833
    %v836 = vrot.slane %v817, 3
    %v837 = vsel %vm600, %v836, %v835
    %v838 = vrot.slane %v818, 2
    %v839 = vsel %vm602, %v838, %v837
    %v840 = vrot.slane %v819, 1
    %v841 = vsel %vm604, %v840, %v839
    %843 = vst.msk [vmem:[#allocation10] sm:$0xff] %vm93, %v841
    %v844 = vmul.f32 %v615, %v619
    %845 = vst.msk [vmem:[#allocation11] sm:$0xff] %vm93, %v844
    // Predicated region
    $region38: #{tpu_custom_call.1} parent=1 // pred_check
      _
    $region39: #{tpu_custom_call.1} parent=1 // pred_check_branch
      %847 = sbr.rel (0) target = $region41
    $region40: #{tpu_custom_call.1} parent=1 // pred_region
      %s849 = ssub.s32 128, 128
      %850 = vsyncadd [#allocation4], %s849
      %s852 = sshll.u32 [#allocation10], 4
      %s853 = int_to_ptr.vmem [resolvable:$true] %s852
      %855 = dma.vmem_to_hbm [thread:$0]  %s853, 128, %s5, [#allocation4]
    $region41: #{tpu_custom_call.1} parent=1 // pred_fallthru
      _
    // Predicated region
    $region42: #{tpu_custom_call.1} parent=1 // pred_check
      _
    $region43: #{tpu_custom_call.1} parent=1 // pred_check_branch
      %857 = sbr.rel (0) target = $region45
    $region44: #{tpu_custom_call.1} parent=1 // pred_region
      %s859 = ssub.s32 128, 128
      %860 = vsyncadd [#allocation12], %s859
      %s862 = sshll.u32 [#allocation11], 4
      %s863 = int_to_ptr.vmem [resolvable:$true] %s862
      %865 = dma.vmem_to_hbm [thread:$0]  %s863, 128, %s6, [#allocation12]
    $region45: #{tpu_custom_call.1} parent=1 // pred_fallthru
      _
    // Predicated region
    $region46: #{tpu_custom_call.1} parent=1 // pred_check
      _
    $region47: #{tpu_custom_call.1} parent=1 // pred_check_branch
      %867 = sbr.rel (0) target = $region49
    $region48: #{tpu_custom_call.1} parent=1 // pred_region
      %868 = dma.done [#allocation4], 128
    $region49: #{tpu_custom_call.1} parent=1 // pred_fallthru
      _
    // Predicated region
    $region50: #{tpu_custom_call.1} parent=1 // pred_check
      _
    $region51: #{tpu_custom_call.1} parent=1 // pred_check_branch
      %870 = sbr.rel (0) target = $region53
    $region52: #{tpu_custom_call.1} parent=1 // pred_region
      %871 = dma.done [#allocation12], 128
    $region53: #{tpu_custom_call.1} parent=1 // pred_fallthru
      _
    %872 = vsyncpa [#allocation3], 1
    %873 = vsyncpa [#allocation6], 1
    %874 = vsyncpa [#allocation9], 1
    %875 = vsyncpa [#allocation4], 1
    %876 = vsyncpa [#allocation12], 1

</llo_original>
